<compile_context>
chip_gen: v5e
topology: v5e:2x2
jax: 0.10.0
libtpu: 0.0.40
codegen_flags: <defaults>
</compile_context>

<pallas_src>
import functools
import math

import jax
import jax.numpy as jnp
from jax.experimental import pallas as pl
from jax.experimental.pallas import tpu as pltpu


# ----------------------------- in-kernel helpers -----------------------------

def _layer_norm(x, gamma, beta, eps=1e-6):
    mean = jnp.mean(x, axis=-1, keepdims=True)
    var = jnp.mean((x - mean) ** 2, axis=-1, keepdims=True)
    return (x - mean) * jax.lax.rsqrt(var + eps) * gamma + beta


# ------------------------------- fused kernel --------------------------------

def fused_tree_encoder_kernel(
        emb_ref, bias_ref,
        ln0g_ref, ln0b_ref,
        wqkv_ref, wo_ref, w1_ref, w2_ref, vecs_ref,
        out_ref, ctx_ref,
        *, n_head, d_k, d_v, d_model, d_inner):
    """grid = (B, L); batch axis parallel, layer axis sequential ("arbitrary").

    out_ref (block (1,S,D), index (b,0,0)) is the resident activation carried across
    the layer axis: initialized at l == 0 from the merged embeddings, updated in place
    every layer, written back to HBM once per b.
    ctx_ref is a VMEM scratch slab (S, H*d_v) collecting per-head attention contexts.
    """
    l = pl.program_id(1)

    # ---- l == 0: LayerNorm of (already merged) scaled word + level embedding ----
    @pl.when(l == 0)
    def _():
        out_ref[0] = _layer_norm(emb_ref[0], ln0g_ref[0], ln0b_ref[0])

    x = out_ref[0]                                   # (S, D) resident activation
    bias = bias_ref[0].astype(jnp.float32)           # (S, S) additive mask bias

    # ---- per-layer small vectors, packed into one (6, Vmax) tile (single DMA) ----
    vecs = vecs_ref[0]
    ln1_g = vecs[0, :d_model]
    ln1_b = vecs[1, :d_model]
    b1 = vecs[2, :d_inner]
    ln2_g = vecs[3, :d_model]
    ln2_b = vecs[4, :d_model]
    b2 = vecs[5, :d_model]

    # -------- self-attention: one wide QKV matmul, per-head static lane slices ----
    qkv = jnp.dot(x, wqkv_ref[0], preferred_element_type=jnp.float32)  # (S, H*(2dk+dv))
    hdk = n_head * d_k
    inv_temp = jnp.float32(1.0 / math.sqrt(d_k))
    # Static per-head loop (n_head small here); switch to lax.fori_loop(unroll=True)
    # for n_head >= 4 to bound vreg live ranges.
    for h in range(n_head):
        qh = qkv[:, h * d_k:(h + 1) * d_k]                              # (S, dk)
        kh = qkv[:, hdk + h * d_k: hdk + (h + 1) * d_k]                 # (S, dk)
        vh = qkv[:, 2 * hdk + h * d_v: 2 * hdk + (h + 1) * d_v]         # (S, dv)
        # q @ k^T without materializing a transposed k (contract axis 1 of both).
        scores = jax.lax.dot_general(
            qh, kh, (((1,), (1,)), ((), ())),
            preferred_element_type=jnp.float32) * inv_temp + bias       # (S, S)
        scores = scores - jnp.max(scores, axis=-1, keepdims=True)
        p = jnp.exp(scores)
        p = p * pl.reciprocal(jnp.sum(p, axis=-1, keepdims=True), approx=True)
        ctx_ref[:, h * d_v:(h + 1) * d_v] = jnp.dot(
            p, vh, preferred_element_type=jnp.float32)                  # (S, dv)

    attn_out = jnp.dot(ctx_ref[...], wo_ref[0],
                       preferred_element_type=jnp.float32)              # (S, D)
    o = _layer_norm(attn_out + x, ln1_g, ln1_b)

    # --------------------------- position-wise FFN -------------------------------
    # TODO(synk): at realistic d_model/d_inner, tile w1/w2 over d_inner with a third
    # "arbitrary" grid axis to stay inside v7x's 64 MiB VMEM.
    hdn = jnp.maximum(
        jnp.dot(o, w1_ref[0], preferred_element_type=jnp.float32) + b1, 0.0)
    f = jnp.dot(hdn, w2_ref[0], preferred_element_type=jnp.float32) + b2
    out_ref[0] = _layer_norm(f + o, ln2_g, ln2_b)


# ---------------------------------- wrapper -----------------------------------

def make_tree_encoder(B, S, d_model, d_inner, n_head, d_k, d_v, n_layers):
    L = n_layers
    vmax = max(d_model, d_inner)
    qkv_w = n_head * (2 * d_k + d_v)

    act_spec = lambda: pl.BlockSpec((1, S, d_model), lambda b, l: (b, 0, 0))

    def per_layer(*dims):
        return pl.BlockSpec((1,) + dims, lambda b, l, _n=len(dims): (l,) + (0,) * _n)

    def shared(*dims):
        return pl.BlockSpec(dims, lambda b, l, _n=len(dims): (0,) * _n)

    fused = pl.pallas_call(
        functools.partial(fused_tree_encoder_kernel,
                          n_head=n_head, d_k=d_k, d_v=d_v,
                          d_model=d_model, d_inner=d_inner),
        out_shape=jax.ShapeDtypeStruct((B, S, d_model), jnp.float32),
        grid=(B, L),
        in_specs=[
            act_spec(),                                          # merged emb (B,S,D)
            pl.BlockSpec((1, S, S), lambda b, l: (b, 0, 0)),     # mask bias  (B,S,S) bf16
            shared(1, d_model), shared(1, d_model),              # ln0 g/b
            per_layer(d_model, qkv_w),                           # w_qkv (L,D,H*(2dk+dv))
            per_layer(n_head * d_v, d_model),                    # w_o   (L,H*dv,D)
            per_layer(d_model, d_inner),                         # w1
            per_layer(d_inner, d_model),                         # w2
            per_layer(6, vmax),                                  # packed ln1/ln2/b1/b2
        ],
        out_specs=act_spec(),
        scratch_shapes=[pltpu.VMEM((S, n_head * d_v), jnp.float32)],   # ctx slab
        compiler_params=pltpu.CompilerParams(
            dimension_semantics=("parallel", "arbitrary"),
            vmem_limit_bytes=32 * 1024 * 1024),
    )

    def forward(src_seq, height_tensor, tree_mask, params):
        # Embedding gathers + merge + mask bias are glue in plain JAX (XLA fuses them).
        word = jnp.take(params["word_emb"], src_seq, axis=0)           # (B,S,D)
        lvl = jnp.take(params["level_emb"], height_tensor, axis=0)     # (B,S,D)
        emb = word * jnp.float32(math.sqrt(d_model)) + lvl             # merged input
        bias = jnp.where(tree_mask == 0, -1e9, 0.0).astype(jnp.bfloat16)
        return fused(emb, bias,
                     params["ln0_g"], params["ln0_b"],
                     params["w_qkv"], params["w_o"],
                     params["w1"], params["w2"], params["vecs"])

    return jax.jit(forward)


# ---------------------------- deterministic params ----------------------------

def init_params(key, vocab, n_layers, n_head, d_k, d_v, d_model, d_inner):
    ks = jax.random.split(key, 10)

    def rnd(k, shape, scale=0.1):
        return jax.random.normal(k, shape, jnp.float32) * scale

    L = n_layers
    vmax = max(d_model, d_inner)

    word_emb = rnd(ks[0], (vocab, d_model))
    level_emb = rnd(ks[1], (10, d_model)).at[0].set(0.0)   # padding_idx=0

    # Wide QKV weight: [ W_q (D,H*dk) | W_k (D,H*dk) | W_v (D,H*dv) ] per layer.
    wq = rnd(ks[2], (L, d_model, n_head * d_k))
    wk = rnd(ks[3], (L, d_model, n_head * d_k))
    wv = rnd(ks[4], (L, d_model, n_head * d_v))
    w_qkv = jnp.concatenate([wq, wk, wv], axis=-1)

    b1 = rnd(ks[7], (L, d_inner))
    b2 = rnd(ks[9], (L, d_model))

    def pad_row(v):
        return jnp.pad(v, ((0, 0), (0, vmax - v.shape[-1])))

    # Packed small per-layer vectors: rows = [ln1_g, ln1_b, b1, ln2_g, ln2_b, b2].
    vecs = jnp.stack([
        pad_row(jnp.ones((L, d_model), jnp.float32)),
        pad_row(jnp.zeros((L, d_model), jnp.float32)),
        pad_row(b1),
        pad_row(jnp.ones((L, d_model), jnp.float32)),
        pad_row(jnp.zeros((L, d_model), jnp.float32)),
        pad_row(b2),
    ], axis=1)                                              # (L, 6, vmax)

    return {
        "word_emb": word_emb,
        "level_emb": level_emb,
        "ln0_g": jnp.ones((1, d_model), jnp.float32),
        "ln0_b": jnp.zeros((1, d_model), jnp.float32),
        "w_qkv": w_qkv,
        "w_o": rnd(ks[5], (L, n_head * d_v, d_model)),
        "w1": rnd(ks[6], (L, d_model, d_inner)),
        "w2": rnd(ks[8], (L, d_inner, d_model)),
        "vecs": vecs,
    }


# ------------------------------------- main ------------------------------------

if __name__ == "__main__":
    B, S = 2, 8
    d_model, d_inner = 32, 64
    n_head, d_k, d_v = 2, 16, 16
    n_layers = 2
    vocab = 20

    key = jax.random.PRNGKey(0)
    kp, k1, k2, k3 = jax.random.split(key, 4)

    params = init_params(kp, vocab, n_layers, n_head, d_k, d_v, d_model, d_inner)

    src_seq = jax.random.randint(k1, (B, S), 1, vocab)
    height_tensor = jax.random.randint(k2, (B, S), 1, 10)
    tree_mask = (jax.random.uniform(k3, (B, S, S)) > 0.3).astype(jnp.int32)
    eye = jnp.eye(S, dtype=jnp.int32)[None]
    tree_mask = jnp.maximum(tree_mask, eye)  # each query attends at least to itself

    forward = make_tree_encoder(B, S, d_model, d_inner, n_head, d_k, d_v, n_layers)
    out = forward(src_seq, height_tensor, tree_mask, params)
    jax.block_until_ready(out)

    assert out.shape == (B, S, d_model) and out.dtype == jnp.float32
    assert bool(jnp.all(jnp.isfinite(out)))
    print("KERNEL_OK")
</pallas_src>

<mosaic_0001>
module attributes {stable_mosaic.version = 11 : i64} {
  func.func @fused_tree_encoder_kernel(%arg0: i32, %arg1: i32, %arg2: memref<1x8x32xf32, #tpu.memory_space<vmem>>, %arg3: memref<1x8x8xbf16, #tpu.memory_space<vmem>>, %arg4: memref<1x32xf32, #tpu.memory_space<vmem>>, %arg5: memref<1x32xf32, #tpu.memory_space<vmem>>, %arg6: memref<1x32x96xf32, #tpu.memory_space<vmem>>, %arg7: memref<1x32x32xf32, #tpu.memory_space<vmem>>, %arg8: memref<1x32x64xf32, #tpu.memory_space<vmem>>, %arg9: memref<1x64x32xf32, #tpu.memory_space<vmem>>, %arg10: memref<1x6x64xf32, #tpu.memory_space<vmem>>, %arg11: memref<1x8x32xf32, #tpu.memory_space<vmem>>, %arg12: memref<8x32xf32, #tpu.memory_space<vmem>>) attributes {dimension_semantics = [#tpu.dimension_semantics<parallel>, #tpu.dimension_semantics<arbitrary>], iteration_bounds = array<i64: 2, 2>, scalar_prefetch = 0 : i64, scratch_operands = 1 : i64, tpu.core_type = #tpu.core_type<tc>, window_params = [{transform_indices = @transform_0, window_bounds = array<i64: 1, 8, 32>}, {transform_indices = @transform_1, window_bounds = array<i64: 1, 8, 8>}, {pipeline_mode = #tpu.pipeline_mode<synchronous>, transform_indices = @transform_2, window_bounds = array<i64: 1, 32>}, {pipeline_mode = #tpu.pipeline_mode<synchronous>, transform_indices = @transform_3, window_bounds = array<i64: 1, 32>}, {transform_indices = @transform_4, window_bounds = array<i64: 1, 32, 96>}, {transform_indices = @transform_5, window_bounds = array<i64: 1, 32, 32>}, {transform_indices = @transform_6, window_bounds = array<i64: 1, 32, 64>}, {transform_indices = @transform_7, window_bounds = array<i64: 1, 64, 32>}, {transform_indices = @transform_8, window_bounds = array<i64: 1, 6, 64>}, {transform_indices = @transform_9, window_bounds = array<i64: 1, 8, 32>}]} {
    %c0_i32 = arith.constant 0 : i32
    %0 = arith.cmpi eq, %arg1, %c0_i32 : i32
    %1 = arith.extui %0 : i1 to i32
    %c0_i32_0 = arith.constant 0 : i32
    %2 = arith.cmpi ne, %1, %c0_i32_0 : i32
    scf.if %2 {
      %c0_53 = arith.constant 0 : index
      %c0_54 = arith.constant 0 : index
      %c0_55 = arith.constant 0 : index
      %134 = vector.load %arg2[%c0_53, %c0_54, %c0_55] : memref<1x8x32xf32, #tpu.memory_space<vmem>>, vector<1x8x32xf32>
      %135 = vector.shape_cast %134 : vector<1x8x32xf32> to vector<8x32xf32>
      %c0_56 = arith.constant 0 : index
      %c0_57 = arith.constant 0 : index
      %136 = vector.load %arg4[%c0_56, %c0_57] : memref<1x32xf32, #tpu.memory_space<vmem>>, vector<1x32xf32>
      %137 = vector.shape_cast %136 : vector<1x32xf32> to vector<32xf32>
      %c0_58 = arith.constant 0 : index
      %c0_59 = arith.constant 0 : index
      %138 = vector.load %arg5[%c0_58, %c0_59] : memref<1x32xf32, #tpu.memory_space<vmem>>, vector<1x32xf32>
      %139 = vector.shape_cast %138 : vector<1x32xf32> to vector<32xf32>
      %cst_60 = arith.constant dense<0.000000e+00> : vector<8xf32>
      %140 = vector.multi_reduction <add>, %135, %cst_60 [1] : vector<8x32xf32> to vector<8xf32>
      %141 = vector.shape_cast %140 : vector<8xf32> to vector<8x1xf32>
      %cst_61 = arith.constant 3.200000e+01 : f32
      %142 = vector.broadcast %cst_61 : f32 to vector<8x1xf32>
      %143 = arith.divf %141, %142 : vector<8x1xf32>
      %144 = vector.broadcast %143 : vector<8x1xf32> to vector<8x32xf32>
      %145 = arith.subf %135, %144 : vector<8x32xf32>
      %146 = arith.mulf %145, %145 : vector<8x32xf32>
      %cst_62 = arith.constant dense<0.000000e+00> : vector<8xf32>
      %147 = vector.multi_reduction <add>, %146, %cst_62 [1] : vector<8x32xf32> to vector<8xf32>
      %148 = vector.shape_cast %147 : vector<8xf32> to vector<8x1xf32>
      %cst_63 = arith.constant 3.200000e+01 : f32
      %149 = vector.broadcast %cst_63 : f32 to vector<8x1xf32>
      %150 = arith.divf %148, %149 : vector<8x1xf32>
      %151 = vector.broadcast %143 : vector<8x1xf32> to vector<8x32xf32>
      %152 = arith.subf %135, %151 : vector<8x32xf32>
      %cst_64 = arith.constant 9.99999997E-7 : f32
      %153 = vector.broadcast %cst_64 : f32 to vector<8x1xf32>
      %154 = arith.addf %150, %153 : vector<8x1xf32>
      %155 = math.rsqrt %154 : vector<8x1xf32>
      %156 = vector.broadcast %155 : vector<8x1xf32> to vector<8x32xf32>
      %157 = arith.mulf %152, %156 : vector<8x32xf32>
      %158 = vector.shape_cast %137 : vector<32xf32> to vector<1x32xf32>
      %159 = vector.broadcast %158 : vector<1x32xf32> to vector<8x32xf32>
      %160 = arith.mulf %157, %159 : vector<8x32xf32>
      %161 = vector.shape_cast %139 : vector<32xf32> to vector<1x32xf32>
      %162 = vector.broadcast %161 : vector<1x32xf32> to vector<8x32xf32>
      %163 = arith.addf %160, %162 : vector<8x32xf32>
      %c0_65 = arith.constant 0 : index
      %c0_66 = arith.constant 0 : index
      %c0_67 = arith.constant 0 : index
      %164 = vector.load %arg11[%c0_65, %c0_66, %c0_67] : memref<1x8x32xf32, #tpu.memory_space<vmem>>, vector<1x8x32xf32>
      %165 = vector.shape_cast %164 : vector<1x8x32xf32> to vector<8x32xf32>
      %166 = vector.shape_cast %163 : vector<8x32xf32> to vector<1x8x32xf32>
      tpu.vector_store %arg11[%c0_65, %c0_66, %c0_67], %166 {strides = array<i32>} : memref<1x8x32xf32, #tpu.memory_space<vmem>>, vector<1x8x32xf32>,
    } else {
    }
    %c0 = arith.constant 0 : index
    %c0_1 = arith.constant 0 : index
    %c0_2 = arith.constant 0 : index
    %3 = vector.load %arg11[%c0, %c0_1, %c0_2] : memref<1x8x32xf32, #tpu.memory_space<vmem>>, vector<1x8x32xf32>
    %4 = vector.shape_cast %3 : vector<1x8x32xf32> to vector<8x32xf32>
    %c0_3 = arith.constant 0 : index
    %c0_4 = arith.constant 0 : index
    %c0_5 = arith.constant 0 : index
    %5 = vector.load %arg3[%c0_3, %c0_4, %c0_5] : memref<1x8x8xbf16, #tpu.memory_space<vmem>>, vector<1x8x8xbf16>
    %6 = vector.shape_cast %5 : vector<1x8x8xbf16> to vector<8x8xbf16>
    %7 = arith.extf %6 : vector<8x8xbf16> to vector<8x8xf32>
    %c0_6 = arith.constant 0 : index
    %c0_7 = arith.constant 0 : index
    %c0_8 = arith.constant 0 : index
    %8 = vector.load %arg10[%c0_6, %c0_7, %c0_8] : memref<1x6x64xf32, #tpu.memory_space<vmem>>, vector<1x6x64xf32>
    %9 = vector.shape_cast %8 : vector<1x6x64xf32> to vector<6x64xf32>
    %10 = vector.extract_strided_slice %9 {offsets = [0, 0], sizes = [1, 32], strides = [1, 1]} : vector<6x64xf32> to vector<1x32xf32>
    %11 = vector.shape_cast %10 : vector<1x32xf32> to vector<32xf32>
    %12 = vector.extract_strided_slice %9 {offsets = [1, 0], sizes = [1, 32], strides = [1, 1]} : vector<6x64xf32> to vector<1x32xf32>
    %13 = vector.shape_cast %12 : vector<1x32xf32> to vector<32xf32>
    %14 = vector.extract_strided_slice %9 {offsets = [2, 0], sizes = [1, 64], strides = [1, 1]} : vector<6x64xf32> to vector<1x64xf32>
    %15 = vector.shape_cast %14 : vector<1x64xf32> to vector<64xf32>
    %16 = vector.extract_strided_slice %9 {offsets = [3, 0], sizes = [1, 32], strides = [1, 1]} : vector<6x64xf32> to vector<1x32xf32>
    %17 = vector.shape_cast %16 : vector<1x32xf32> to vector<32xf32>
    %18 = vector.extract_strided_slice %9 {offsets = [4, 0], sizes = [1, 32], strides = [1, 1]} : vector<6x64xf32> to vector<1x32xf32>
    %19 = vector.shape_cast %18 : vector<1x32xf32> to vector<32xf32>
    %20 = vector.extract_strided_slice %9 {offsets = [5, 0], sizes = [1, 32], strides = [1, 1]} : vector<6x64xf32> to vector<1x32xf32>
    %21 = vector.shape_cast %20 : vector<1x32xf32> to vector<32xf32>
    %c0_9 = arith.constant 0 : index
    %c0_10 = arith.constant 0 : index
    %c0_11 = arith.constant 0 : index
    %22 = vector.load %arg6[%c0_9, %c0_10, %c0_11] : memref<1x32x96xf32, #tpu.memory_space<vmem>>, vector<1x32x96xf32>
    %23 = vector.shape_cast %22 : vector<1x32x96xf32> to vector<32x96xf32>
    %cst = arith.constant dense<0.000000e+00> : vector<8x96xf32>
    %24 = tpu.matmul %4, %23, %cst {dimension_numbers = #tpu.dot_dimension_numbers<[1], [0], [0], [1], [0, 0, 1, 1], [], []>} : vector<8x32xf32>, vector<32x96xf32>, vector<8x96xf32> -> vector<8x96xf32>
    %25 = vector.extract_strided_slice %24 {offsets = [0, 0], sizes = [8, 16], strides = [1, 1]} : vector<8x96xf32> to vector<8x16xf32>
    %26 = vector.extract_strided_slice %24 {offsets = [0, 32], sizes = [8, 16], strides = [1, 1]} : vector<8x96xf32> to vector<8x16xf32>
    %27 = vector.extract_strided_slice %24 {offsets = [0, 64], sizes = [8, 16], strides = [1, 1]} : vector<8x96xf32> to vector<8x16xf32>
    %cst_12 = arith.constant dense<0.000000e+00> : vector<8x8xf32>
    %28 = tpu.matmul %25, %26, %cst_12 {dimension_numbers = #tpu.dot_dimension_numbers<[1], [1], [0], [0], [0, 0, 1, 0], [], []>} : vector<8x16xf32>, vector<8x16xf32>, vector<8x8xf32> -> vector<8x8xf32>
    %cst_13 = arith.constant 2.500000e-01 : f32
    %29 = vector.broadcast %cst_13 : f32 to vector<8x8xf32>
    %30 = arith.mulf %28, %29 : vector<8x8xf32>
    %31 = arith.addf %30, %7 : vector<8x8xf32>
    %cst_14 = arith.constant dense<0xFF800000> : vector<8xf32>
    %32 = vector.multi_reduction <maximumf>, %31, %cst_14 [1] : vector<8x8xf32> to vector<8xf32>
    %33 = vector.shape_cast %32 : vector<8xf32> to vector<8x1xf32>
    %34 = vector.broadcast %33 : vector<8x1xf32> to vector<8x8xf32>
    %35 = arith.subf %31, %34 : vector<8x8xf32>
    %36 = math.exp %35 : vector<8x8xf32>
    %cst_15 = arith.constant dense<0.000000e+00> : vector<8xf32>
    %37 = vector.multi_reduction <add>, %36, %cst_15 [1] : vector<8x8xf32> to vector<8xf32>
    %38 = vector.shape_cast %37 : vector<8xf32> to vector<8x1xf32>
    %39 = tpu.reciprocal %38 {approx = true} : vector<8x1xf32> -> vector<8x1xf32>
    %40 = vector.broadcast %39 : vector<8x1xf32> to vector<8x8xf32>
    %41 = arith.mulf %36, %40 : vector<8x8xf32>
    %cst_16 = arith.constant dense<0.000000e+00> : vector<8x16xf32>
    %42 = tpu.matmul %41, %27, %cst_16 {dimension_numbers = #tpu.dot_dimension_numbers<[1], [0], [0], [1], [0, 0, 1, 1], [], []>} : vector<8x8xf32>, vector<8x16xf32>, vector<8x16xf32> -> vector<8x16xf32>
    %c0_17 = arith.constant 0 : index
    %c0_18 = arith.constant 0 : index
    %43 = vector.load %arg12[%c0_17, %c0_18] : memref<8x32xf32, #tpu.memory_space<vmem>>, vector<8x16xf32>
    tpu.vector_store %arg12[%c0_17, %c0_18], %42 {strides = array<i32>} : memref<8x32xf32, #tpu.memory_space<vmem>>, vector<8x16xf32>,
    %44 = vector.extract_strided_slice %24 {offsets = [0, 16], sizes = [8, 16], strides = [1, 1]} : vector<8x96xf32> to vector<8x16xf32>
    %45 = vector.extract_strided_slice %24 {offsets = [0, 48], sizes = [8, 16], strides = [1, 1]} : vector<8x96xf32> to vector<8x16xf32>
    %46 = vector.extract_strided_slice %24 {offsets = [0, 80], sizes = [8, 16], strides = [1, 1]} : vector<8x96xf32> to vector<8x16xf32>
    %cst_19 = arith.constant dense<0.000000e+00> : vector<8x8xf32>
    %47 = tpu.matmul %44, %45, %cst_19 {dimension_numbers = #tpu.dot_dimension_numbers<[1], [1], [0], [0], [0, 0, 1, 0], [], []>} : vector<8x16xf32>, vector<8x16xf32>, vector<8x8xf32> -> vector<8x8xf32>
    %cst_20 = arith.constant 2.500000e-01 : f32
    %48 = vector.broadcast %cst_20 : f32 to vector<8x8xf32>
    %49 = arith.mulf %47, %48 : vector<8x8xf32>
    %50 = arith.addf %49, %7 : vector<8x8xf32>
    %cst_21 = arith.constant dense<0xFF800000> : vector<8xf32>
    %51 = vector.multi_reduction <maximumf>, %50, %cst_21 [1] : vector<8x8xf32> to vector<8xf32>
    %52 = vector.shape_cast %51 : vector<8xf32> to vector<8x1xf32>
    %53 = vector.broadcast %52 : vector<8x1xf32> to vector<8x8xf32>
    %54 = arith.subf %50, %53 : vector<8x8xf32>
    %55 = math.exp %54 : vector<8x8xf32>
    %cst_22 = arith.constant dense<0.000000e+00> : vector<8xf32>
    %56 = vector.multi_reduction <add>, %55, %cst_22 [1] : vector<8x8xf32> to vector<8xf32>
    %57 = vector.shape_cast %56 : vector<8xf32> to vector<8x1xf32>
    %58 = tpu.reciprocal %57 {approx = true} : vector<8x1xf32> -> vector<8x1xf32>
    %59 = vector.broadcast %58 : vector<8x1xf32> to vector<8x8xf32>
    %60 = arith.mulf %55, %59 : vector<8x8xf32>
    %cst_23 = arith.constant dense<0.000000e+00> : vector<8x16xf32>
    %61 = tpu.matmul %60, %46, %cst_23 {dimension_numbers = #tpu.dot_dimension_numbers<[1], [0], [0], [1], [0, 0, 1, 1], [], []>} : vector<8x8xf32>, vector<8x16xf32>, vector<8x16xf32> -> vector<8x16xf32>
    %c0_24 = arith.constant 0 : index
    %c16 = arith.constant 16 : index
    %62 = vector.load %arg12[%c0_24, %c16] : memref<8x32xf32, #tpu.memory_space<vmem>>, vector<8x16xf32>
    tpu.vector_store %arg12[%c0_24, %c16], %61 {strides = array<i32>} : memref<8x32xf32, #tpu.memory_space<vmem>>, vector<8x16xf32>,
    %c0_25 = arith.constant 0 : index
    %c0_26 = arith.constant 0 : index
    %63 = vector.load %arg12[%c0_25, %c0_26] : memref<8x32xf32, #tpu.memory_space<vmem>>, vector<8x32xf32>
    %c0_27 = arith.constant 0 : index
    %c0_28 = arith.constant 0 : index
    %c0_29 = arith.constant 0 : index
    %64 = vector.load %arg7[%c0_27, %c0_28, %c0_29] : memref<1x32x32xf32, #tpu.memory_space<vmem>>, vector<1x32x32xf32>
    %65 = vector.shape_cast %64 : vector<1x32x32xf32> to vector<32x32xf32>
    %cst_30 = arith.constant dense<0.000000e+00> : vector<8x32xf32>
    %66 = tpu.matmul %63, %65, %cst_30 {dimension_numbers = #tpu.dot_dimension_numbers<[1], [0], [0], [1], [0, 0, 1, 1], [], []>} : vector<8x32xf32>, vector<32x32xf32>, vector<8x32xf32> -> vector<8x32xf32>
    %67 = arith.addf %66, %4 : vector<8x32xf32>
    %cst_31 = arith.constant dense<0.000000e+00> : vector<8xf32>
    %68 = vector.multi_reduction <add>, %67, %cst_31 [1] : vector<8x32xf32> to vector<8xf32>
    %69 = vector.shape_cast %68 : vector<8xf32> to vector<8x1xf32>
    %cst_32 = arith.constant 3.200000e+01 : f32
    %70 = vector.broadcast %cst_32 : f32 to vector<8x1xf32>
    %71 = arith.divf %69, %70 : vector<8x1xf32>
    %72 = vector.broadcast %71 : vector<8x1xf32> to vector<8x32xf32>
    %73 = arith.subf %67, %72 : vector<8x32xf32>
    %74 = arith.mulf %73, %73 : vector<8x32xf32>
    %cst_33 = arith.constant dense<0.000000e+00> : vector<8xf32>
    %75 = vector.multi_reduction <add>, %74, %cst_33 [1] : vector<8x32xf32> to vector<8xf32>
    %76 = vector.shape_cast %75 : vector<8xf32> to vector<8x1xf32>
    %cst_34 = arith.constant 3.200000e+01 : f32
    %77 = vector.broadcast %cst_34 : f32 to vector<8x1xf32>
    %78 = arith.divf %76, %77 : vector<8x1xf32>
    %79 = vector.broadcast %71 : vector<8x1xf32> to vector<8x32xf32>
    %80 = arith.subf %67, %79 : vector<8x32xf32>
    %cst_35 = arith.constant 9.99999997E-7 : f32
    %81 = vector.broadcast %cst_35 : f32 to vector<8x1xf32>
    %82 = arith.addf %78, %81 : vector<8x1xf32>
    %83 = math.rsqrt %82 : vector<8x1xf32>
    %84 = vector.broadcast %83 : vector<8x1xf32> to vector<8x32xf32>
    %85 = arith.mulf %80, %84 : vector<8x32xf32>
    %86 = vector.shape_cast %11 : vector<32xf32> to vector<1x32xf32>
    %87 = vector.broadcast %86 : vector<1x32xf32> to vector<8x32xf32>
    %88 = arith.mulf %85, %87 : vector<8x32xf32>
    %89 = vector.shape_cast %13 : vector<32xf32> to vector<1x32xf32>
    %90 = vector.broadcast %89 : vector<1x32xf32> to vector<8x32xf32>
    %91 = arith.addf %88, %90 : vector<8x32xf32>
    %c0_36 = arith.constant 0 : index
    %c0_37 = arith.constant 0 : index
    %c0_38 = arith.constant 0 : index
    %92 = vector.load %arg8[%c0_36, %c0_37, %c0_38] : memref<1x32x64xf32, #tpu.memory_space<vmem>>, vector<1x32x64xf32>
    %93 = vector.shape_cast %92 : vector<1x32x64xf32> to vector<32x64xf32>
    %cst_39 = arith.constant dense<0.000000e+00> : vector<8x64xf32>
    %94 = tpu.matmul %91, %93, %cst_39 {dimension_numbers = #tpu.dot_dimension_numbers<[1], [0], [0], [1], [0, 0, 1, 1], [], []>} : vector<8x32xf32>, vector<32x64xf32>, vector<8x64xf32> -> vector<8x64xf32>
    %95 = vector.shape_cast %15 : vector<64xf32> to vector<1x64xf32>
    %96 = vector.broadcast %95 : vector<1x64xf32> to vector<8x64xf32>
    %97 = arith.addf %94, %96 : vector<8x64xf32>
    %cst_40 = arith.constant 0.000000e+00 : f32
    %98 = vector.broadcast %cst_40 : f32 to vector<8x64xf32>
    %99 = arith.maximumf %97, %98 : vector<8x64xf32>
    %c0_41 = arith.constant 0 : index
    %c0_42 = arith.constant 0 : index
    %c0_43 = arith.constant 0 : index
    %100 = vector.load %arg9[%c0_41, %c0_42, %c0_43] : memref<1x64x32xf32, #tpu.memory_space<vmem>>, vector<1x64x32xf32>
    %101 = vector.shape_cast %100 : vector<1x64x32xf32> to vector<64x32xf32>
    %cst_44 = arith.constant dense<0.000000e+00> : vector<8x32xf32>
    %102 = tpu.matmul %99, %101, %cst_44 {dimension_numbers = #tpu.dot_dimension_numbers<[1], [0], [0], [1], [0, 0, 1, 1], [], []>} : vector<8x64xf32>, vector<64x32xf32>, vector<8x32xf32> -> vector<8x32xf32>
    %103 = vector.shape_cast %21 : vector<32xf32> to vector<1x32xf32>
    %104 = vector.broadcast %103 : vector<1x32xf32> to vector<8x32xf32>
    %105 = arith.addf %102, %104 : vector<8x32xf32>
    %106 = arith.addf %105, %91 : vector<8x32xf32>
    %cst_45 = arith.constant dense<0.000000e+00> : vector<8xf32>
    %107 = vector.multi_reduction <add>, %106, %cst_45 [1] : vector<8x32xf32> to vector<8xf32>
    %108 = vector.shape_cast %107 : vector<8xf32> to vector<8x1xf32>
    %cst_46 = arith.constant 3.200000e+01 : f32
    %109 = vector.broadcast %cst_46 : f32 to vector<8x1xf32>
    %110 = arith.divf %108, %109 : vector<8x1xf32>
    %111 = vector.broadcast %110 : vector<8x1xf32> to vector<8x32xf32>
    %112 = arith.subf %106, %111 : vector<8x32xf32>
    %113 = arith.mulf %112, %112 : vector<8x32xf32>
    %cst_47 = arith.constant dense<0.000000e+00> : vector<8xf32>
    %114 = vector.multi_reduction <add>, %113, %cst_47 [1] : vector<8x32xf32> to vector<8xf32>
    %115 = vector.shape_cast %114 : vector<8xf32> to vector<8x1xf32>
    %cst_48 = arith.constant 3.200000e+01 : f32
    %116 = vector.broadcast %cst_48 : f32 to vector<8x1xf32>
    %117 = arith.divf %115, %116 : vector<8x1xf32>
    %118 = vector.broadcast %110 : vector<8x1xf32> to vector<8x32xf32>
    %119 = arith.subf %106, %118 : vector<8x32xf32>
    %cst_49 = arith.constant 9.99999997E-7 : f32
    %120 = vector.broadcast %cst_49 : f32 to vector<8x1xf32>
    %121 = arith.addf %117, %120 : vector<8x1xf32>
    %122 = math.rsqrt %121 : vector<8x1xf32>
    %123 = vector.broadcast %122 : vector<8x1xf32> to vector<8x32xf32>
    %124 = arith.mulf %119, %123 : vector<8x32xf32>
    %125 = vector.shape_cast %17 : vector<32xf32> to vector<1x32xf32>
    %126 = vector.broadcast %125 : vector<1x32xf32> to vector<8x32xf32>
    %127 = arith.mulf %124, %126 : vector<8x32xf32>
    %128 = vector.shape_cast %19 : vector<32xf32> to vector<1x32xf32>
    %129 = vector.broadcast %128 : vector<1x32xf32> to vector<8x32xf32>
    %130 = arith.addf %127, %129 : vector<8x32xf32>
    %c0_50 = arith.constant 0 : index
    %c0_51 = arith.constant 0 : index
    %c0_52 = arith.constant 0 : index
    %131 = vector.load %arg11[%c0_50, %c0_51, %c0_52] : memref<1x8x32xf32, #tpu.memory_space<vmem>>, vector<1x8x32xf32>
    %132 = vector.shape_cast %131 : vector<1x8x32xf32> to vector<8x32xf32>
    %133 = vector.shape_cast %130 : vector<8x32xf32> to vector<1x8x32xf32>
    tpu.vector_store %arg11[%c0_50, %c0_51, %c0_52], %133 {strides = array<i32>} : memref<1x8x32xf32, #tpu.memory_space<vmem>>, vector<1x8x32xf32>,
    return
  }
  func.func @transform_0(%arg0: i32, %arg1: i32) -> (i32, i32, i32) {
    %c0_i32 = arith.constant 0 : i32
    %c0_i32_0 = arith.constant 0 : i32
    %c0_i32_1 = arith.constant 0 : i32
    return %arg0, %c0_i32, %c0_i32_0 : i32, i32, i32
  }
  func.func @transform_1(%arg0: i32, %arg1: i32) -> (i32, i32, i32) {
    %c0_i32 = arith.constant 0 : i32
    %c0_i32_0 = arith.constant 0 : i32
    %c0_i32_1 = arith.constant 0 : i32
    return %arg0, %c0_i32, %c0_i32_0 : i32, i32, i32
  }
  func.func @transform_2(%arg0: i32, %arg1: i32) -> (i32, i32) {
    %c0_i32 = arith.constant 0 : i32
    %c0_i32_0 = arith.constant 0 : i32
    %c0_i32_1 = arith.constant 0 : i32
    return %c0_i32, %c0_i32_0 : i32, i32
  }
  func.func @transform_3(%arg0: i32, %arg1: i32) -> (i32, i32) {
    %c0_i32 = arith.constant 0 : i32
    %c0_i32_0 = arith.constant 0 : i32
    %c0_i32_1 = arith.constant 0 : i32
    return %c0_i32, %c0_i32_0 : i32, i32
  }
  func.func @transform_4(%arg0: i32, %arg1: i32) -> (i32, i32, i32) {
    %c0_i32 = arith.constant 0 : i32
    %c0_i32_0 = arith.constant 0 : i32
    %c0_i32_1 = arith.constant 0 : i32
    return %arg1, %c0_i32, %c0_i32_0 : i32, i32, i32
  }
  func.func @transform_5(%arg0: i32, %arg1: i32) -> (i32, i32, i32) {
    %c0_i32 = arith.constant 0 : i32
    %c0_i32_0 = arith.constant 0 : i32
    %c0_i32_1 = arith.constant 0 : i32
    return %arg1, %c0_i32, %c0_i32_0 : i32, i32, i32
  }
  func.func @transform_6(%arg0: i32, %arg1: i32) -> (i32, i32, i32) {
    %c0_i32 = arith.constant 0 : i32
    %c0_i32_0 = arith.constant 0 : i32
    %c0_i32_1 = arith.constant 0 : i32
    return %arg1, %c0_i32, %c0_i32_0 : i32, i32, i32
  }
  func.func @transform_7(%arg0: i32, %arg1: i32) -> (i32, i32, i32) {
    %c0_i32 = arith.constant 0 : i32
    %c0_i32_0 = arith.constant 0 : i32
    %c0_i32_1 = arith.constant 0 : i32
    return %arg1, %c0_i32, %c0_i32_0 : i32, i32, i32
  }
  func.func @transform_8(%arg0: i32, %arg1: i32) -> (i32, i32, i32) {
    %c0_i32 = arith.constant 0 : i32
    %c0_i32_0 = arith.constant 0 : i32
    %c0_i32_1 = arith.constant 0 : i32
    return %arg1, %c0_i32, %c0_i32_0 : i32, i32, i32
  }
  func.func @transform_9(%arg0: i32, %arg1: i32) -> (i32, i32, i32) {
    %c0_i32 = arith.constant 0 : i32
    %c0_i32_0 = arith.constant 0 : i32
    %c0_i32_1 = arith.constant 0 : i32
    return %arg0, %c0_i32, %c0_i32_0 : i32, i32, i32
  }
}

</mosaic_0001>

<llo_original>
// kernel: forward.1
$region0: #{forward.1}
  #allocation0 [shape = 'u32[]', space=smem, size = 0x4, offset = 0x4, fixed_abs, tag = 'smem constant byte address 0x4 - core index']
  #allocation1 [shape = 'u32[72,128]{1,0:T(1,128)}', space=vmem, size = 0x9000, scoped, tag = 'internal scratch']
  #allocation2 [shape = 'f32[8,32]{1,0:T(8,128)}', space=vmem, size = 0x1000, scoped, tag = 'scratch operand']
  %s0 = inlined_call_operand.vmem [shape: f32[2,8,32], index: 0, kind: input, shape index: {}]
  %s1 = inlined_call_operand.vmem [shape: bf16[2,8,8], index: 1, kind: input, shape index: {}]
  %s2 = inlined_call_operand.vmem [shape: f32[1,32], index: 2, kind: input, shape index: {}]
  %s3 = inlined_call_operand.vmem [shape: f32[1,32], index: 3, kind: input, shape index: {}]
  %s4 = inlined_call_operand.vmem [shape: f32[2,32,96], index: 4, kind: input, shape index: {}]
  %s5 = inlined_call_operand.vmem [shape: f32[2,32,32], index: 5, kind: input, shape index: {}]
  %s6 = inlined_call_operand.vmem [shape: f32[2,32,64], index: 6, kind: input, shape index: {}]
  %s7 = inlined_call_operand.vmem [shape: f32[2,64,32], index: 7, kind: input, shape index: {}]
  %s8 = inlined_call_operand.vmem [shape: f32[2,6,64], index: 8, kind: input, shape index: {}]
  %s9 = inlined_call_operand.hbm [shape: f32[2,8,32], index: 9, kind: output, shape index: {}]
  %s10 = sld [smem:[#allocation0]]
  $region73: #{forward.1} parent=0
    _
  %s12 = ssub.s32 1, %s10
  %s13 = scalar_select 0, %s12, %s10
  $region1: #{forward.1} parent=0
    #allocation3 [shape = 'u8[8192]{0}', space=vmem, size = 0x2000, scoped, tag = 'output window, operand 0']
    #allocation4 [shape = 's32[2]{0}', space=sflag, size = 0x8, scoped, tag = 'scoped memory for forward.1']
    %14 = vsyncpa [#allocation4], 0
    %s15 = scalar_lea.sflag [#allocation4], 1
    %16 = vsyncpa %s15, 0
    loop: start=0, step=1, limit=6
    $region2: #{forward.1} parent=1 // loop_pre_header
      _
    $region3: #{forward.1} parent=1 // loop_header
      %s18 = sphi 0, %s22
      %p19 = scmp.ge.s32.totalorder %s18, 6
      %s25 = sphi 0, %s37
      %s26 = sphi 0, %s33
      %s27 = sphi 0, %s25
      %s28 = sphi 0, %s26
      %s29 = sphi 0, %s27
      %s30 = sphi 0, %s28
      %s40 = sphi 0, %s42
      %s43 = sphi 0, %s40
      %s44 = sphi 0, %s43
      %s60 = sphi 0, %s44
      %s66 = sphi 0, %s68
      %s69 = sphi 0, %s66
      %s70 = sphi 0, %s69
      %s86 = sphi 0, %s70
      %s90 = sphi 0, %s90
      %s92 = sphi 0, %s90
      %s93 = sphi 0, %s92
      %s107 = sphi 0, %s93
      %s111 = sphi 0, %s111
      %s113 = sphi 0, %s111
      %s114 = sphi 0, %s113
      %s128 = sphi 0, %s114
      %s134 = sphi 0, %s136
      %s137 = sphi 0, %s134
      %s138 = sphi 0, %s137
      %s154 = sphi 0, %s138
      %s160 = sphi 0, %s162
      %s163 = sphi 0, %s160
      %s164 = sphi 0, %s163
      %s180 = sphi 0, %s164
      %s186 = sphi 0, %s188
      %s189 = sphi 0, %s186
      %s190 = sphi 0, %s189
      %s206 = sphi 0, %s190
      %s212 = sphi 0, %s214
      %s215 = sphi 0, %s212
      %s216 = sphi 0, %s215
      %s232 = sphi 0, %s216
      %s238 = sphi 0, %s240
      %s241 = sphi 0, %s238
      %s242 = sphi 0, %s241
      %s258 = sphi 0, %s242
      %s264 = sphi 0, %s266
      %s267 = sphi 0, %s264
      %s268 = sphi 0, %s267
      %s284 = sphi 0, %s268
    $region4: #{forward.1} parent=1 // loop_header_branch
      %21 = sbr.rel (%p19) target = $region8
    $region5: #{forward.1} parent=1 // loop_body
      %s23 = ssub.s32 %s18, 1
      %s24 = ssub.s32 %s18, 2
      %s31 = sadd.s32 1, %s26
      %p32 = scmp.ge.s32.totalorder %s31, 2
      %s33 = scalar_select %p32, 0, %s31
      %s34 = sadd.s32 1, %s25
      %s35 = scalar_select %p32, %s34, %s25
      %p36 = scmp.ge.s32.totalorder %s35, 2
      %s37 = scalar_select %p36, 0, %s35
      %s38 = ssub.s32 %s25, %s37
      %p39 = scmp.eq.s32.totalorder %s38, 0
      %s41 = sadd.s32 %s40, 1
      %s42 = scalar_select %p39, %s40, %s41
      %p45 = pneg %p39
      %p46 = scmp.eq.s32.totalorder %s18, 3
      %p47 = por %p45, %p46
      %p48 = scmp.ne.s32.totalorder %s40, %s43
      %p49 = scmp.eq.s32.totalorder %s18, 0
      %p50 = por %p48, %p49
      %p51 = scmp.ne.s32.totalorder %s40, %s43
      %p52 = scmp.eq.s32.totalorder %s23, 3
      %p53 = por %p51, %p52
      %p54 = scmp.ne.s32.totalorder %s43, %s44
      %p55 = scmp.eq.s32.totalorder %s23, 0
      %p56 = por %p54, %p55
      %p57 = scmp.ne.s32.totalorder %s43, %s44
      %p58 = scmp.eq.s32.totalorder %s24, 3
      %p59 = por %p57, %p58
      %p61 = scmp.ne.s32.totalorder %s44, %s60
      %p62 = scmp.eq.s32.totalorder %s24, 0
      %p63 = por %p61, %p62
      %s64 = ssub.s32 %s25, %s37
      %p65 = scmp.eq.s32.totalorder %s64, 0
      %s67 = sadd.s32 %s66, 1
      %s68 = scalar_select %p65, %s66, %s67
      %p71 = pneg %p65
      %p72 = scmp.eq.s32.totalorder %s18, 3
      %p73 = por %p71, %p72
      %p74 = scmp.ne.s32.totalorder %s66, %s69
      %p75 = scmp.eq.s32.totalorder %s18, 0
      %p76 = por %p74, %p75
      %p77 = scmp.ne.s32.totalorder %s66, %s69
      %p78 = scmp.eq.s32.totalorder %s23, 3
      %p79 = por %p77, %p78
      %p80 = scmp.ne.s32.totalorder %s69, %s70
      %p81 = scmp.eq.s32.totalorder %s23, 0
      %p82 = por %p80, %p81
      %p83 = scmp.ne.s32.totalorder %s69, %s70
      %p84 = scmp.eq.s32.totalorder %s24, 3
      %p85 = por %p83, %p84
      %p87 = scmp.ne.s32.totalorder %s70, %s86
      %p88 = scmp.eq.s32.totalorder %s24, 0
      %p89 = por %p87, %p88
      %s91 = sadd.s32 %s90, 1
      %p94 = scmp.eq.s32.totalorder %s18, 3
      %p95 = scmp.ne.s32.totalorder %s90, %s92
      %p96 = scmp.eq.s32.totalorder %s18, 0
      %p97 = por %p95, %p96
      %p98 = scmp.ne.s32.totalorder %s90, %s92
      %p99 = scmp.eq.s32.totalorder %s23, 3
      %p100 = por %p98, %p99
      %p101 = scmp.ne.s32.totalorder %s92, %s93
      %p102 = scmp.eq.s32.totalorder %s23, 0
      %p103 = por %p101, %p102
      %p104 = scmp.ne.s32.totalorder %s92, %s93
      %p105 = scmp.eq.s32.totalorder %s24, 3
      %p106 = por %p104, %p105
      %p108 = scmp.ne.s32.totalorder %s93, %s107
      %p109 = scmp.eq.s32.totalorder %s24, 0
      %p110 = por %p108, %p109
      %s112 = sadd.s32 %s111, 1
      %p115 = scmp.eq.s32.totalorder %s18, 3
      %p116 = scmp.ne.s32.totalorder %s111, %s113
      %p117 = scmp.eq.s32.totalorder %s18, 0
      %p118 = por %p116, %p117
      %p119 = scmp.ne.s32.totalorder %s111, %s113
      %p120 = scmp.eq.s32.totalorder %s23, 3
      %p121 = por %p119, %p120
      %p122 = scmp.ne.s32.totalorder %s113, %s114
      %p123 = scmp.eq.s32.totalorder %s23, 0
      %p124 = por %p122, %p123
      %p125 = scmp.ne.s32.totalorder %s113, %s114
      %p126 = scmp.eq.s32.totalorder %s24, 3
      %p127 = por %p125, %p126
      %p129 = scmp.ne.s32.totalorder %s114, %s128
      %p130 = scmp.eq.s32.totalorder %s24, 0
      %p131 = por %p129, %p130
      %s132 = ssub.s32 %s26, %s33
      %p133 = scmp.eq.s32.totalorder %s132, 0
      %s135 = sadd.s32 %s134, 1
      %s136 = scalar_select %p133, %s134, %s135
      %p139 = pneg %p133
      %p140 = scmp.eq.s32.totalorder %s18, 3
      %p141 = por %p139, %p140
      %p142 = scmp.ne.s32.totalorder %s134, %s137
      %p143 = scmp.eq.s32.totalorder %s18, 0
      %p144 = por %p142, %p143
      %p145 = scmp.ne.s32.totalorder %s134, %s137
      %p146 = scmp.eq.s32.totalorder %s23, 3
      %p147 = por %p145, %p146
      %p148 = scmp.ne.s32.totalorder %s137, %s138
      %p149 = scmp.eq.s32.totalorder %s23, 0
      %p150 = por %p148, %p149
      %p151 = scmp.ne.s32.totalorder %s137, %s138
      %p152 = scmp.eq.s32.totalorder %s24, 3
      %p153 = por %p151, %p152
      %p155 = scmp.ne.s32.totalorder %s138, %s154
      %p156 = scmp.eq.s32.totalorder %s24, 0
      %p157 = por %p155, %p156
      %s158 = ssub.s32 %s26, %s33
      %p159 = scmp.eq.s32.totalorder %s158, 0
      %s161 = sadd.s32 %s160, 1
      %s162 = scalar_select %p159, %s160, %s161
      %p165 = pneg %p159
      %p166 = scmp.eq.s32.totalorder %s18, 3
      %p167 = por %p165, %p166
      %p168 = scmp.ne.s32.totalorder %s160, %s163
      %p169 = scmp.eq.s32.totalorder %s18, 0
      %p170 = por %p168, %p169
      %p171 = scmp.ne.s32.totalorder %s160, %s163
      %p172 = scmp.eq.s32.totalorder %s23, 3
      %p173 = por %p171, %p172
      %p174 = scmp.ne.s32.totalorder %s163, %s164
      %p175 = scmp.eq.s32.totalorder %s23, 0
      %p176 = por %p174, %p175
      %p177 = scmp.ne.s32.totalorder %s163, %s164
      %p178 = scmp.eq.s32.totalorder %s24, 3
      %p179 = por %p177, %p178
      %p181 = scmp.ne.s32.totalorder %s164, %s180
      %p182 = scmp.eq.s32.totalorder %s24, 0
      %p183 = por %p181, %p182
      %s184 = ssub.s32 %s26, %s33
      %p185 = scmp.eq.s32.totalorder %s184, 0
      %s187 = sadd.s32 %s186, 1
      %s188 = scalar_select %p185, %s186, %s187
      %p191 = pneg %p185
      %p192 = scmp.eq.s32.totalorder %s18, 3
      %p193 = por %p191, %p192
      %p194 = scmp.ne.s32.totalorder %s186, %s189
      %p195 = scmp.eq.s32.totalorder %s18, 0
      %p196 = por %p194, %p195
      %p197 = scmp.ne.s32.totalorder %s186, %s189
      %p198 = scmp.eq.s32.totalorder %s23, 3
      %p199 = por %p197, %p198
      %p200 = scmp.ne.s32.totalorder %s189, %s190
      %p201 = scmp.eq.s32.totalorder %s23, 0
      %p202 = por %p200, %p201
      %p203 = scmp.ne.s32.totalorder %s189, %s190
      %p204 = scmp.eq.s32.totalorder %s24, 3
      %p205 = por %p203, %p204
      %p207 = scmp.ne.s32.totalorder %s190, %s206
      %p208 = scmp.eq.s32.totalorder %s24, 0
      %p209 = por %p207, %p208
      %s210 = ssub.s32 %s26, %s33
      %p211 = scmp.eq.s32.totalorder %s210, 0
      %s213 = sadd.s32 %s212, 1
      %s214 = scalar_select %p211, %s212, %s213
      %p217 = pneg %p211
      %p218 = scmp.eq.s32.totalorder %s18, 3
      %p219 = por %p217, %p218
      %p220 = scmp.ne.s32.totalorder %s212, %s215
      %p221 = scmp.eq.s32.totalorder %s18, 0
      %p222 = por %p220, %p221
      %p223 = scmp.ne.s32.totalorder %s212, %s215
      %p224 = scmp.eq.s32.totalorder %s23, 3
      %p225 = por %p223, %p224
      %p226 = scmp.ne.s32.totalorder %s215, %s216
      %p227 = scmp.eq.s32.totalorder %s23, 0
      %p228 = por %p226, %p227
      %p229 = scmp.ne.s32.totalorder %s215, %s216
      %p230 = scmp.eq.s32.totalorder %s24, 3
      %p231 = por %p229, %p230
      %p233 = scmp.ne.s32.totalorder %s216, %s232
      %p234 = scmp.eq.s32.totalorder %s24, 0
      %p235 = por %p233, %p234
      %s236 = ssub.s32 %s26, %s33
      %p237 = scmp.eq.s32.totalorder %s236, 0
      %s239 = sadd.s32 %s238, 1
      %s240 = scalar_select %p237, %s238, %s239
      %p243 = pneg %p237
      %p244 = scmp.eq.s32.totalorder %s18, 3
      %p245 = por %p243, %p244
      %p246 = scmp.ne.s32.totalorder %s238, %s241
      %p247 = scmp.eq.s32.totalorder %s18, 0
      %p248 = por %p246, %p247
      %p249 = scmp.ne.s32.totalorder %s238, %s241
      %p250 = scmp.eq.s32.totalorder %s23, 3
      %p251 = por %p249, %p250
      %p252 = scmp.ne.s32.totalorder %s241, %s242
      %p253 = scmp.eq.s32.totalorder %s23, 0
      %p254 = por %p252, %p253
      %p255 = scmp.ne.s32.totalorder %s241, %s242
      %p256 = scmp.eq.s32.totalorder %s24, 3
      %p257 = por %p255, %p256
      %p259 = scmp.ne.s32.totalorder %s242, %s258
      %p260 = scmp.eq.s32.totalorder %s24, 0
      %p261 = por %p259, %p260
      %s262 = ssub.s32 %s25, %s37
      %p263 = scmp.eq.s32.totalorder %s262, 0
      %s265 = sadd.s32 %s264, 1
      %s266 = scalar_select %p263, %s264, %s265
      %p269 = pneg %p263
      %p270 = scmp.eq.s32.totalorder %s18, 3
      %p271 = por %p269, %p270
      %p272 = scmp.ne.s32.totalorder %s264, %s267
      %p273 = scmp.eq.s32.totalorder %s18, 0
      %p274 = por %p272, %p273
      %p275 = scmp.ne.s32.totalorder %s264, %s267
      %p276 = scmp.eq.s32.totalorder %s23, 3
      %p277 = por %p275, %p276
      %p278 = scmp.ne.s32.totalorder %s267, %s268
      %p279 = scmp.eq.s32.totalorder %s23, 0
      %p280 = por %p278, %p279
      %p281 = scmp.ne.s32.totalorder %s267, %s268
      %p282 = scmp.eq.s32.totalorder %s24, 3
      %p283 = por %p281, %p282
      %p285 = scmp.ne.s32.totalorder %s268, %s284
      %p286 = scmp.eq.s32.totalorder %s24, 0
      %p287 = por %p285, %p286
      %p288 = scmp.le.s32.totalorder 1, %s18
      %p289 = scmp.lt.s32.totalorder %s18, 5
      %p290 = pnand %p288, %p289
      %p291 = pneg %p290
      // Predicated region
      $region9: #{forward.1} parent=5 // pred_check
        _
      $region10: #{forward.1} parent=5 // pred_check_branch
        %293 = sbr.rel (%p290) target = $region12
      $region11: #{forward.1} parent=5 // pred_region
        %s294 = ssub.s32 %s18, 1
        // Predicated region
        $region13: #{forward.1} parent=11 // pred_check
          %p295 = pneg %p103
        $region14: #{forward.1} parent=11 // pred_check_branch
          %297 = sbr.rel (%p295) target = $region16
        $region15: #{forward.1} parent=11 // pred_region
          _
        $region16: #{forward.1} parent=11 // pred_fallthru
          _
        // Predicated region
        $region17: #{forward.1} parent=11 // pred_check
          %p298 = pneg %p124
        $region18: #{forward.1} parent=11 // pred_check_branch
          %300 = sbr.rel (%p298) target = $region20
        $region19: #{forward.1} parent=11 // pred_region
          _
        $region20: #{forward.1} parent=11 // pred_fallthru
          _
      $region12: #{forward.1} parent=5 // pred_fallthru
        _
      %p301 = scmp.lt.s32.totalorder %s18, 4
      // Predicated region
      $region21: #{forward.1} parent=5 // pred_check
        %p302 = pneg %p301
      $region22: #{forward.1} parent=5 // pred_check_branch
        %304 = sbr.rel (%p302) target = $region24
      $region23: #{forward.1} parent=5 // pred_region
        // Predicated region
        $region25: #{forward.1} parent=23 // pred_check
          %p305 = pneg %p50
        $region26: #{forward.1} parent=23 // pred_check_branch
          %307 = sbr.rel (%p305) target = $region28
        $region27: #{forward.1} parent=23 // pred_region
          %p308 = scmp.lt.s32.totalorder %s25, 1
          %s309 = scalar_select %p308, %s25, 1
          %s310 = smul.addr %s309, 8
          %s311 = scalar_lea.vmem %s0, %s310
        $region28: #{forward.1} parent=23 // pred_fallthru
          _
        // Predicated region
        $region29: #{forward.1} parent=23 // pred_check
          %p312 = pneg %p76
        $region30: #{forward.1} parent=23 // pred_check_branch
          %314 = sbr.rel (%p312) target = $region32
        $region31: #{forward.1} parent=23 // pred_region
          %p315 = scmp.lt.s32.totalorder %s25, 1
          %s316 = scalar_select %p315, %s25, 1
          %s317 = smul.addr %s316, 4
          %s318 = scalar_lea.vmem %s1, %s317
        $region32: #{forward.1} parent=23 // pred_fallthru
          _
        // Predicated region
        $region33: #{forward.1} parent=23 // pred_check
          %p319 = pneg %p144
        $region34: #{forward.1} parent=23 // pred_check_branch
          %321 = sbr.rel (%p319) target = $region36
        $region35: #{forward.1} parent=23 // pred_region
          %p322 = scmp.lt.s32.totalorder %s26, 1
          %s323 = scalar_select %p322, %s26, 1
          %s324 = smul.addr %s323, 4
          %s325 = smul.addr %s324, 8
          %s326 = scalar_lea.vmem %s4, %s325
        $region36: #{forward.1} parent=23 // pred_fallthru
          _
        // Predicated region
        $region37: #{forward.1} parent=23 // pred_check
          %p327 = pneg %p170
        $region38: #{forward.1} parent=23 // pred_check_branch
          %329 = sbr.rel (%p327) target = $region40
        $region39: #{forward.1} parent=23 // pred_region
          %p330 = scmp.lt.s32.totalorder %s26, 1
          %s331 = scalar_select %p330, %s26, 1
          %s332 = smul.addr %s331, 4
          %s333 = smul.addr %s332, 8
          %s334 = scalar_lea.vmem %s5, %s333
        $region40: #{forward.1} parent=23 // pred_fallthru
          _
        // Predicated region
        $region41: #{forward.1} parent=23 // pred_check
          %p335 = pneg %p196
        $region42: #{forward.1} parent=23 // pred_check_branch
          %337 = sbr.rel (%p335) target = $region44
        $region43: #{forward.1} parent=23 // pred_region
          %p338 = scmp.lt.s32.totalorder %s26, 1
          %s339 = scalar_select %p338, %s26, 1
          %s340 = smul.addr %s339, 4
          %s341 = smul.addr %s340, 8
          %s342 = scalar_lea.vmem %s6, %s341
        $region44: #{forward.1} parent=23 // pred_fallthru
          _
        // Predicated region
        $region45: #{forward.1} parent=23 // pred_check
          %p343 = pneg %p222
        $region46: #{forward.1} parent=23 // pred_check_branch
          %345 = sbr.rel (%p343) target = $region48
        $region47: #{forward.1} parent=23 // pred_region
          %p346 = scmp.lt.s32.totalorder %s26, 1
          %s347 = scalar_select %p346, %s26, 1
          %s348 = smul.addr %s347, 8
          %s349 = smul.addr %s348, 8
          %s350 = scalar_lea.vmem %s7, %s349
        $region48: #{forward.1} parent=23 // pred_fallthru
          _
        // Predicated region
        $region49: #{forward.1} parent=23 // pred_check
          %p351 = pneg %p248
        $region50: #{forward.1} parent=23 // pred_check_branch
          %353 = sbr.rel (%p351) target = $region52
        $region51: #{forward.1} parent=23 // pred_region
          %p354 = scmp.lt.s32.totalorder %s26, 1
          %s355 = scalar_select %p354, %s26, 1
          %s356 = smul.addr %s355, 8
          %s357 = scalar_lea.vmem %s8, %s356
        $region52: #{forward.1} parent=23 // pred_fallthru
          _
      $region24: #{forward.1} parent=5 // pred_fallthru
        _
      %p358 = scmp.le.s32.totalorder 1, %s18
      %p359 = scmp.lt.s32.totalorder %s18, 5
      %p360 = pnand %p358, %p359
      %p361 = pneg %p360
      // Predicated region
      $region53: #{forward.1} parent=5 // pred_check
        _
      $region54: #{forward.1} parent=5 // pred_check_branch
        %363 = sbr.rel (%p360) target = $region56
      $region55: #{forward.1} parent=5 // pred_region
        %s364 = ssub.s32 %s18, 1
        %p365 = scmp.lt.s32.totalorder %s27, 1
        %s366 = scalar_select %p365, %s27, 1
        %s367 = smul.addr %s366, 8
        %s368 = scalar_lea.vmem %s0, %s367
        %p369 = pneg %p56
        %p370 = pneg %p53
        %p371 = scmp.lt.s32.totalorder %s27, 1
        %s372 = scalar_select %p371, %s27, 1
        %s373 = smul.addr %s372, 4
        %s374 = scalar_lea.vmem %s1, %s373
        %p375 = pneg %p82
        %p376 = pneg %p79
        %p377 = pneg %p103
        %p378 = pneg %p100
        %p379 = pneg %p124
        %p380 = pneg %p121
        %p381 = scmp.lt.s32.totalorder %s28, 1
        %s382 = scalar_select %p381, %s28, 1
        %s383 = smul.addr %s382, 4
        %s384 = smul.addr %s383, 8
        %s385 = scalar_lea.vmem %s4, %s384
        %p386 = pneg %p150
        %p387 = pneg %p147
        %p388 = scmp.lt.s32.totalorder %s28, 1
        %s389 = scalar_select %p388, %s28, 1
        %s390 = smul.addr %s389, 4
        %s391 = smul.addr %s390, 8
        %s392 = scalar_lea.vmem %s5, %s391
        %p393 = pneg %p176
        %p394 = pneg %p173
        %p395 = scmp.lt.s32.totalorder %s28, 1
        %s396 = scalar_select %p395, %s28, 1
        %s397 = smul.addr %s396, 4
        %s398 = smul.addr %s397, 8
        %s399 = scalar_lea.vmem %s6, %s398
        %p400 = pneg %p202
        %p401 = pneg %p199
        %p402 = scmp.lt.s32.totalorder %s28, 1
        %s403 = scalar_select %p402, %s28, 1
        %s404 = smul.addr %s403, 8
        %s405 = smul.addr %s404, 8
        %s406 = scalar_lea.vmem %s7, %s405
        %p407 = pneg %p228
        %p408 = pneg %p225
        %p409 = scmp.lt.s32.totalorder %s28, 1
        %s410 = scalar_select %p409, %s28, 1
        %s411 = smul.addr %s410, 8
        %s412 = scalar_lea.vmem %s8, %s411
        %p413 = pneg %p254
        %p414 = pneg %p251
        %p415 = pneg %p280
        %p416 = pneg %p277
        %s417 = sand.u32 %s267, 1
        %s418 = scalar_lea.sflag [#allocation4], %s417
        %s419 = sand.u32 %s267, 1
        %s420 = smul.addr %s419, 8
        %s421 = scalar_lea.vmem [#allocation3], %s420
        %p422 = scmp.lt.s32.totalorder %s27, 1
        %s423 = scalar_select %p422, %s27, 1
        %s424 = smul.addr %s423, 8
        %s425 = scalar_lea.vmem %s0, %s424
        %p426 = scmp.lt.s32.totalorder %s27, 1
        %s427 = scalar_select %p426, %s27, 1
        %s428 = smul.addr %s427, 4
        %s429 = scalar_lea.vmem %s1, %s428
        %p430 = scmp.lt.s32.totalorder %s28, 1
        %s431 = scalar_select %p430, %s28, 1
        %s432 = smul.addr %s431, 4
        %s433 = smul.addr %s432, 8
        %s434 = scalar_lea.vmem %s4, %s433
        %p435 = scmp.lt.s32.totalorder %s28, 1
        %s436 = scalar_select %p435, %s28, 1
        %s437 = smul.addr %s436, 4
        %s438 = smul.addr %s437, 8
        %s439 = scalar_lea.vmem %s5, %s438
        %p440 = scmp.lt.s32.totalorder %s28, 1
        %s441 = scalar_select %p440, %s28, 1
        %s442 = smul.addr %s441, 4
        %s443 = smul.addr %s442, 8
        %s444 = scalar_lea.vmem %s6, %s443
        %p445 = scmp.lt.s32.totalorder %s28, 1
        %s446 = scalar_select %p445, %s28, 1
        %s447 = smul.addr %s446, 8
        %s448 = smul.addr %s447, 8
        %s449 = scalar_lea.vmem %s7, %s448
        %p450 = scmp.lt.s32.totalorder %s28, 1
        %s451 = scalar_select %p450, %s28, 1
        %s452 = smul.addr %s451, 8
        %s453 = scalar_lea.vmem %s8, %s452
        %p454 = scmp.eq.s32.totalorder %s28, 0
        // Predicated region
        $region57: #{forward.1} parent=55 // pred_check
          %p455 = pneg %p454
        $region58: #{forward.1} parent=55 // pred_check_branch
          %457 = sbr.rel (%p455) target = $region60
        $region59: #{forward.1} parent=55 // pred_region
          %v458 = vld [vmem:[%s425] sm:$0xff]
          %v459 = vld [vmem:[%s2] sm:$0x1]
          %v460 = vld [vmem:[%s3] sm:$0x1]
          %vm461 = vcmask 261120
          %v462 = vsel %vm461, %v458, 0.0
          %463 = vadd.xlane.f32.xlu0 %v462
          %v464 = vpop.xlane.xlu0 %463
          %v465 = vrcp.pop 32.0
          %v466 = vmul.f32 32.0, %v465
          %v467 = vsub.f32 1.0, %v466
          %v468 = vmul.f32 %v465, %v467
          %v469 = vadd.f32 %v465, %v468
          %vm470 = vweird.f32 %v465
          %v471 = vsel %vm470, %v465, %v469
          %v472 = vmul.f32 %v464, %v471
          %v473 = vsub.f32 %v458, %v472
          %v474 = vmul.f32 %v473, %v473
          %v475 = vsel %vm461, %v474, 0.0
          %476 = vadd.xlane.f32.xlu0 %v475
          %v477 = vpop.xlane.xlu0 %476
          %v478 = vmul.f32 %v477, %v471
          %v479 = vadd.f32 %v478, 1e-06
          %v480 = vrsqrt.pop %v479
          %v481 = vmul.f32 %v480, %v479
          %v482 = vmul.f32 %v481, %v480
          %v483 = vmul.f32 0.5, %v482
          %v484 = vsub.f32 1.5, %v483
          %v485 = vmul.f32 %v480, %v484
          %vm486 = vweird.f32 %v479
          %vm487 = vweird.f32 %v480
          %vm488 = vmor %vm486, %vm487
          %v489 = vsel %vm488, %v480, %v485
          %v490 = vmul.f32 %v473, %v489
          %v492 = vperm.slane %v459, 0
          %v494 = vmul.f32 %v490, %v492
          %v496 = vperm.slane %v460, 0
          %v498 = vadd.f32 %v494, %v496
          %499 = vst.msk [vmem:[%s421] sm:$0xff] %vm461, %v498
        $region60: #{forward.1} parent=55 // pred_fallthru
          _
        %v500 = vld [vmem:[%s421] sm:$0xff]
        %v501 = vld [vmem:[%s429] sm:$0xf]
        %v502 = vunpack.c.l.bf16 %v501
        %v503 = vld [vmem:[%s453] sm:$0x3f]
        %v504 = vld [vmem:[%s434] sm:$0xff]
        %v505 = vld [vmem:[%s434 + $0x8] sm:$0xff]
        %v506 = vld [vmem:[%s434 + $0x10] sm:$0xff]
        %v507 = vld [vmem:[%s434 + $0x18] sm:$0xff]
        %vm508 = vcmask 261120
        %v510 = vsel %vm508, %v500, 0
        %512 = vmatpush.msra.mxu0 0.0
        %513 = vmatpush.msra.mxu0 0.0
        %514 = vmatpush.msra.mxu0 0.0
        %515 = vmatpush.msra.mxu0 0.0
        %516 = vmatpush.msra.mxu0 0.0
        %517 = vmatpush.msra.mxu0 0.0
        %518 = vmatpush.msra.mxu0 0.0
        %519 = vmatpush.msra.mxu0 0.0
        %520 = vmatpush.msra.mxu0 0.0
        %521 = vmatpush.msra.mxu0 0.0
        %522 = vmatpush.msra.mxu0 0.0
        %523 = vmatpush.msra.mxu0 0.0
        %524 = vmatpush.msra.mxu0 %v507
        %525 = vmatpush.msra.mxu0 %v506
        %526 = vmatpush.msra.mxu0 %v505
        %527 = vmatpush.msra.mxu0 %v504
        %528 = vmatmul.f32.gmra.mxu0 %v510
        %v529 = vpop.f32.mrf.mxu0
        %v530 = vadd.f32 0.0, %v529
        %531 = vdwg.mxu0
        %533 = vrot.lane.b32.xlu0 %v530, 96
        %v534 = vpop.permute.xlu0 %533
        %vm535 = vcmask 130048
        %v536 = vsel %vm535, %v530, 0
        %v538 = vsel %vm535, %v534, 0
        %540 = vmatpush.xpose.msra.mxu0 0.0
        %541 = vmatpush.xpose.msra.mxu0 0.0
        %542 = vmatpush.xpose.msra.mxu0 0.0
        %543 = vmatpush.xpose.msra.mxu0 0.0
        %544 = vmatpush.xpose.msra.mxu0 0.0
        %545 = vmatpush.xpose.msra.mxu0 0.0
        %546 = vmatpush.xpose.msra.mxu0 0.0
        %547 = vmatpush.xpose.msra.mxu0 0.0
        %548 = vmatpush.xpose.msra.mxu0 0.0
        %549 = vmatpush.xpose.msra.mxu0 0.0
        %550 = vmatpush.xpose.msra.mxu0 0.0
        %551 = vmatpush.xpose.msra.mxu0 0.0
        %552 = vmatpush.xpose.msra.mxu0 0.0
        %553 = vmatpush.xpose.msra.mxu0 0.0
        %554 = vmatpush.xpose.msra.mxu0 0.0
        %555 = vmatpush.xpose.msra.mxu0 %v538
        %556 = vmatmul.f32.gmra.mxu0 %v536
        %v557 = vpop.f32.mrf.mxu0
        %v558 = vadd.f32 0.0, %v557
        %559 = vdwg.mxu0
        %v560 = vmul.f32 %v558, 0.25
        %v561 = vadd.f32 %v560, %v502
        %vm562 = vcmask 64512
        %v563 = vsel %vm562, %v561, -inf
        %564 = vmax.xlane.f32.xlu0 %v563
        %v565 = vpop.xlane.xlu0 %564
        %v566 = vsub.f32 %v561, %v565
        %v567 = vmul.f32 %v566, 1.442695
        %v568 = vpow.pop %v567
        %v569 = vsel %vm562, %v568, 0.0
        %570 = vadd.xlane.f32.xlu0 %v569
        %v571 = vpop.xlane.xlu0 %570
        %v572 = vrcp.pop %v571
        %v573 = vmul.f32 %v568, %v572
        %574 = vrot.lane.b32.xlu0 %v530, 64
        %v575 = vpop.permute.xlu0 %574
        %v578 = vsel %vm562, %v573, 0
        %580 = vmatpush.msra.mxu0 0.0
        %581 = vmatpush.msra.mxu0 0.0
        %582 = vmatpush.msra.mxu0 0.0
        %583 = vmatpush.msra.mxu0 0.0
        %584 = vmatpush.msra.mxu0 0.0
        %585 = vmatpush.msra.mxu0 0.0
        %586 = vmatpush.msra.mxu0 0.0
        %587 = vmatpush.msra.mxu0 0.0
        %588 = vmatpush.msra.mxu0 0.0
        %589 = vmatpush.msra.mxu0 0.0
        %590 = vmatpush.msra.mxu0 0.0
        %591 = vmatpush.msra.mxu0 0.0
        %592 = vmatpush.msra.mxu0 0.0
        %593 = vmatpush.msra.mxu0 0.0
        %594 = vmatpush.msra.mxu0 0.0
        %595 = vmatpush.msra.mxu0 %v575
        %596 = vmatmul.f32.gmra.mxu0 %v578
        %v597 = vpop.f32.mrf.mxu0
        %v598 = vadd.f32 0.0, %v597
        %599 = vdwg.mxu0
        %600 = vst.msk [vmem:[#allocation2] sm:$0xff] %vm535, %v598
        %601 = vrot.lane.b32.xlu0 %v530, 112
        %v602 = vpop.permute.xlu0 %601
        %603 = vrot.lane.b32.xlu0 %v530, 80
        %v604 = vpop.permute.xlu0 %603
        %v605 = vsel %vm535, %v602, 0
        %v607 = vsel %vm535, %v604, 0
        %609 = vmatpush.xpose.msra.mxu0 0.0
        %610 = vmatpush.xpose.msra.mxu0 0.0
        %611 = vmatpush.xpose.msra.mxu0 0.0
        %612 = vmatpush.xpose.msra.mxu0 0.0
        %613 = vmatpush.xpose.msra.mxu0 0.0
        %614 = vmatpush.xpose.msra.mxu0 0.0
        %615 = vmatpush.xpose.msra.mxu0 0.0
        %616 = vmatpush.xpose.msra.mxu0 0.0
        %617 = vmatpush.xpose.msra.mxu0 0.0
        %618 = vmatpush.xpose.msra.mxu0 0.0
        %619 = vmatpush.xpose.msra.mxu0 0.0
        %620 = vmatpush.xpose.msra.mxu0 0.0
        %621 = vmatpush.xpose.msra.mxu0 0.0
        %622 = vmatpush.xpose.msra.mxu0 0.0
        %623 = vmatpush.xpose.msra.mxu0 0.0
        %624 = vmatpush.xpose.msra.mxu0 %v607
        %625 = vmatmul.f32.gmra.mxu0 %v605
        %v626 = vpop.f32.mrf.mxu0
        %v627 = vadd.f32 0.0, %v626
        %628 = vdwg.mxu0
        %v629 = vmul.f32 %v627, 0.25
        %v630 = vadd.f32 %v629, %v502
        %v631 = vsel %vm562, %v630, -inf
        %632 = vmax.xlane.f32.xlu0 %v631
        %v633 = vpop.xlane.xlu0 %632
        %v634 = vsub.f32 %v630, %v633
        %v635 = vmul.f32 %v634, 1.442695
        %v636 = vpow.pop %v635
        %v637 = vsel %vm562, %v636, 0.0
        %638 = vadd.xlane.f32.xlu0 %v637
        %v639 = vpop.xlane.xlu0 %638
        %v640 = vrcp.pop %v639
        %v641 = vmul.f32 %v636, %v640
        %642 = vrot.lane.b32.xlu0 %v530, 48
        %v643 = vpop.permute.xlu0 %642
        %v646 = vsel %vm562, %v641, 0
        %648 = vmatpush.msra.mxu0 0.0
        %649 = vmatpush.msra.mxu0 0.0
        %650 = vmatpush.msra.mxu0 0.0
        %651 = vmatpush.msra.mxu0 0.0
        %652 = vmatpush.msra.mxu0 0.0
        %653 = vmatpush.msra.mxu0 0.0
        %654 = vmatpush.msra.mxu0 0.0
        %655 = vmatpush.msra.mxu0 0.0
        %656 = vmatpush.msra.mxu0 0.0
        %657 = vmatpush.msra.mxu0 0.0
        %658 = vmatpush.msra.mxu0 0.0
        %659 = vmatpush.msra.mxu0 0.0
        %660 = vmatpush.msra.mxu0 0.0
        %661 = vmatpush.msra.mxu0 0.0
        %662 = vmatpush.msra.mxu0 0.0
        %663 = vmatpush.msra.mxu0 %v643
        %664 = vmatmul.f32.gmra.mxu0 %v646
        %v665 = vpop.f32.mrf.mxu0
        %v666 = vadd.f32 0.0, %v665
        %667 = vdwg.mxu0
        %669 = vrot.lane.b32.xlu0 %v666, 16
        %v670 = vpop.permute.xlu0 %669
        %vm672 = vcmask 261248
        %673 = vst.msk [vmem:[#allocation2] sm:$0xff] %vm672, %v670
        %v674 = vld [vmem:[#allocation2] sm:$0xff]
        %v675 = vld [vmem:[%s439] sm:$0xff]
        %v676 = vld [vmem:[%s439 + $0x8] sm:$0xff]
        %v677 = vld [vmem:[%s439 + $0x10] sm:$0xff]
        %v678 = vld [vmem:[%s439 + $0x18] sm:$0xff]
        %v680 = vsel %vm508, %v674, 0
        %682 = vmatpush.msra.mxu0 0.0
        %683 = vmatpush.msra.mxu0 0.0
        %684 = vmatpush.msra.mxu0 0.0
        %685 = vmatpush.msra.mxu0 0.0
        %686 = vmatpush.msra.mxu0 0.0
        %687 = vmatpush.msra.mxu0 0.0
        %688 = vmatpush.msra.mxu0 0.0
        %689 = vmatpush.msra.mxu0 0.0
        %690 = vmatpush.msra.mxu0 0.0
        %691 = vmatpush.msra.mxu0 0.0
        %692 = vmatpush.msra.mxu0 0.0
        %693 = vmatpush.msra.mxu0 0.0
        %694 = vmatpush.msra.mxu0 %v678
        %695 = vmatpush.msra.mxu0 %v677
        %696 = vmatpush.msra.mxu0 %v676
        %697 = vmatpush.msra.mxu0 %v675
        %698 = vmatmul.f32.gmra.mxu0 %v680
        %v699 = vpop.f32.mrf.mxu0
        %v700 = vadd.f32 %v500, %v699
        %701 = vdwg.mxu0
        %v702 = vsel %vm508, %v700, 0.0
        %703 = vadd.xlane.f32.xlu0 %v702
        %v704 = vpop.xlane.xlu0 %703
        %v705 = vrcp.pop 32.0
        %v706 = vmul.f32 32.0, %v705
        %v707 = vsub.f32 1.0, %v706
        %v708 = vmul.f32 %v705, %v707
        %v709 = vadd.f32 %v705, %v708
        %vm710 = vweird.f32 %v705
        %v711 = vsel %vm710, %v705, %v709
        %v712 = vmul.f32 %v704, %v711
        %v713 = vsub.f32 %v700, %v712
        %v714 = vmul.f32 %v713, %v713
        %v715 = vsel %vm508, %v714, 0.0
        %716 = vadd.xlane.f32.xlu0 %v715
        %v717 = vpop.xlane.xlu0 %716
        %v718 = vmul.f32 %v717, %v711
        %v719 = vadd.f32 %v718, 1e-06
        %v720 = vrsqrt.pop %v719
        %v721 = vmul.f32 %v720, %v719
        %v722 = vmul.f32 %v721, %v720
        %v723 = vmul.f32 0.5, %v722
        %v724 = vsub.f32 1.5, %v723
        %v725 = vmul.f32 %v720, %v724
        %vm726 = vweird.f32 %v719
        %vm727 = vweird.f32 %v720
        %vm728 = vmor %vm726, %vm727
        %v729 = vsel %vm728, %v720, %v725
        %v730 = vmul.f32 %v713, %v729
        %v731 = vperm.slane %v503, 0
        %v732 = vmul.f32 %v730, %v731
        %v733 = vperm.slane %v503, 1
        %v734 = vadd.f32 %v732, %v733
        %v735 = vld [vmem:[%s444] sm:$0xff]
        %v736 = vld [vmem:[%s444 + $0x8] sm:$0xff]
        %v737 = vld [vmem:[%s444 + $0x10] sm:$0xff]
        %v738 = vld [vmem:[%s444 + $0x18] sm:$0xff]
        %v739 = vperm.slane %v503, 2
        %v741 = vsel %vm508, %v734, 0
        %743 = vmatpush.msra.mxu0 0.0
        %744 = vmatpush.msra.mxu0 0.0
        %745 = vmatpush.msra.mxu0 0.0
        %746 = vmatpush.msra.mxu0 0.0
        %747 = vmatpush.msra.mxu0 0.0
        %748 = vmatpush.msra.mxu0 0.0
        %749 = vmatpush.msra.mxu0 0.0
        %750 = vmatpush.msra.mxu0 0.0
        %751 = vmatpush.msra.mxu0 0.0
        %752 = vmatpush.msra.mxu0 0.0
        %753 = vmatpush.msra.mxu0 0.0
        %754 = vmatpush.msra.mxu0 0.0
        %755 = vmatpush.msra.mxu0 %v738
        %756 = vmatpush.msra.mxu0 %v737
        %757 = vmatpush.msra.mxu0 %v736
        %758 = vmatpush.msra.mxu0 %v735
        %759 = vmatmul.f32.gmra.mxu0 %v741
        %v760 = vpop.f32.mrf.mxu0
        %v761 = vadd.f32 %v739, %v760
        %762 = vdwg.mxu0
        %v763 = vmax.f32 %v761, 0.0
        %v764 = vld [vmem:[%s449] sm:$0xff]
        %v765 = vld [vmem:[%s449 + $0x8] sm:$0xff]
        %v766 = vld [vmem:[%s449 + $0x10] sm:$0xff]
        %v767 = vld [vmem:[%s449 + $0x18] sm:$0xff]
        %v768 = vld [vmem:[%s449 + $0x20] sm:$0xff]
        %v769 = vld [vmem:[%s449 + $0x28] sm:$0xff]
        %v770 = vld [vmem:[%s449 + $0x30] sm:$0xff]
        %v771 = vld [vmem:[%s449 + $0x38] sm:$0xff]
        %v772 = vperm.slane %v503, 5
        %vm773 = vcmask 523264
        %v775 = vsel %vm773, %v763, 0
        %777 = vmatpush.msra.mxu0 0.0
        %778 = vmatpush.msra.mxu0 0.0
        %779 = vmatpush.msra.mxu0 0.0
        %780 = vmatpush.msra.mxu0 0.0
        %781 = vmatpush.msra.mxu0 0.0
        %782 = vmatpush.msra.mxu0 0.0
        %783 = vmatpush.msra.mxu0 0.0
        %784 = vmatpush.msra.mxu0 0.0
        %785 = vmatpush.msra.mxu0 %v771
        %786 = vmatpush.msra.mxu0 %v770
        %787 = vmatpush.msra.mxu0 %v769
        %788 = vmatpush.msra.mxu0 %v768
        %789 = vmatpush.msra.mxu0 %v767
        %790 = vmatpush.msra.mxu0 %v766
        %791 = vmatpush.msra.mxu0 %v765
        %792 = vmatpush.msra.mxu0 %v764
        %793 = vmatmul.f32.gmra.mxu0 %v775
        %v794 = vpop.f32.mrf.mxu0
        %v795 = vadd.f32 %v772, %v794
        %796 = vdwg.mxu0
        %v797 = vadd.f32 %v795, %v734
        %v798 = vsel %vm508, %v797, 0.0
        %799 = vadd.xlane.f32.xlu0 %v798
        %v800 = vpop.xlane.xlu0 %799
        %v801 = vmul.f32 %v800, %v711
        %v802 = vsub.f32 %v797, %v801
        %v803 = vmul.f32 %v802, %v802
        %v804 = vsel %vm508, %v803, 0.0
        %805 = vadd.xlane.f32.xlu0 %v804
        %v806 = vpop.xlane.xlu0 %805
        %v807 = vmul.f32 %v806, %v711
        %v808 = vadd.f32 %v807, 1e-06
        %v809 = vrsqrt.pop %v808
        %v810 = vmul.f32 %v809, %v808
        %v811 = vmul.f32 %v810, %v809
        %v812 = vmul.f32 0.5, %v811
        %v813 = vsub.f32 1.5, %v812
        %v814 = vmul.f32 %v809, %v813
        %vm815 = vweird.f32 %v808
        %vm816 = vweird.f32 %v809
        %vm817 = vmor %vm815, %vm816
        %v818 = vsel %vm817, %v809, %v814
        %v819 = vmul.f32 %v802, %v818
        %v820 = vperm.slane %v503, 3
        %v821 = vmul.f32 %v819, %v820
        %v822 = vperm.slane %v503, 4
        %v823 = vadd.f32 %v821, %v822
        %824 = vst.msk [vmem:[%s421] sm:$0xff] %vm508, %v823
        %s825 = sand.u32 %s267, 1
        %s826 = scalar_lea.sflag [#allocation4], %s825
        %s827 = sand.u32 %s267, 1
        %s828 = smul.addr %s827, 8
        %s829 = scalar_lea.vmem [#allocation3], %s828
        // Predicated region
        $region61: #{forward.1} parent=55 // pred_check
          %p830 = pneg %p277
        $region62: #{forward.1} parent=55 // pred_check_branch
          %832 = sbr.rel (%p830) target = $region64
        $region63: #{forward.1} parent=55 // pred_region
          %834 = vsyncadd %s826, 0
          %s835 = smul.addr %s27, 8
          %s836 = scalar_lea.hbm %s9, %s835
          %s838 = sshll.u32 %s829, 4
          %s839 = int_to_ptr.vmem [resolvable:$true] %s838
          %s840 = sshll.u32 %s836, 4
          %s841 = int_to_ptr.hbm [resolvable:$true] %s840
          %843 = dma.vmem_to_hbm [thread:$0]  %s839, 128, %s841, %s826
        $region64: #{forward.1} parent=55 // pred_fallthru
          _
      $region56: #{forward.1} parent=5 // pred_fallthru
        _
      %p844 = scmp.le.s32.totalorder 2, %s18
      // Predicated region
      $region65: #{forward.1} parent=5 // pred_check
        %p845 = pneg %p844
      $region66: #{forward.1} parent=5 // pred_check_branch
        %847 = sbr.rel (%p845) target = $region68
      $region67: #{forward.1} parent=5 // pred_region
        %s848 = ssub.s32 %s18, 2
        // Predicated region
        $region69: #{forward.1} parent=67 // pred_check
          %p849 = pneg %p283
        $region70: #{forward.1} parent=67 // pred_check_branch
          %851 = sbr.rel (%p849) target = $region72
        $region71: #{forward.1} parent=67 // pred_region
          %s852 = sand.u32 %s268, 1
          %s853 = scalar_lea.sflag [#allocation4], %s852
          %s854 = sand.u32 %s268, 1
          %s855 = smul.addr %s854, 8
          %s856 = scalar_lea.vmem [#allocation3], %s855
          %858 = dma.done %s853, 128
        $region72: #{forward.1} parent=67 // pred_fallthru
          _
      $region68: #{forward.1} parent=5 // pred_fallthru
        _
    $region6: #{forward.1} parent=1 // loop_footer
      %s22 = sadd.s32 1, %s18
    $region7: #{forward.1} parent=1 // loop_footer_branch
      %17 = sbr.rel target = $region3
    $region8: #{forward.1} parent=1 // loop_exit
      _
    %859 = vsyncpa [#allocation4], 1
    %s860 = scalar_lea.sflag [#allocation4], 1
    %861 = vsyncpa %s860, 1

</llo_original>
